<compile_context>
chip_gen: v5e
topology: v5e:2x2
jax: 0.10.0
libtpu: 0.0.40
codegen_flags: <defaults>
</compile_context>

<pallas_src>
import functools

import jax
import jax.numpy as jnp
from jax import lax
from jax.experimental import pallas as pl
from jax.experimental.pallas import tpu as pltpu

_LANES = 128
_SUBLANES = 8
# Rows folded per inner-loop iteration (8 f32 vregs per input -> no spills).
_CHUNK_ROWS = 64
# 4096*128*4 B = 2 MiB per f32 input block; x2 inputs x2 buffers = 8 MiB VMEM.
_MAX_BLOCK_ROWS = 4096


def _loss_kernel(out_ref, tgt_ref, sse_ref, xor_ref, *, block_rows, chunk,
                 valid_rows, needs_mask):
    i = pl.program_id(0)
    n_chunks = block_rows // chunk
    row_base = i * block_rows

    if needs_mask:
        # Only emitted when the last grid block extends past the real rows.
        row_iota = lax.broadcasted_iota(jnp.int32, (chunk, _LANES), 0)

    def body(j, carry):
        sse_part, xor_part = carry
        start = pl.multiple_of(j * chunk, chunk)
        o = out_ref[pl.ds(start, chunk), :].astype(jnp.float32)
        t = tgt_ref[pl.ds(start, chunk), :].astype(jnp.float32)

        # --- MSE partial ---------------------------------------------------
        d = o - t
        sq = d * d

        # --- BCE on thresholded {0,1} values, PyTorch semantics (-100 log
        #     clamp): per-element loss is exactly 100 iff (o>0) != (t>0).
        #     We accumulate the mismatch count; the 100x scale is applied once
        #     in the JAX-side epilogue.
        mism = (o > 0.0) != (t > 0.0)

        if needs_mask:
            valid = (row_iota + (row_base + start)) < valid_rows
            sq = jnp.where(valid, sq, 0.0)
            mismf = jnp.where(mism & valid, 1.0, 0.0)
        else:
            mismf = jnp.where(mism, 1.0, 0.0)

        # Fold the chunk down to a single (8, 128) vreg tile (pure VALU adds,
        # register-resident) before accumulating into the carries.
        sq = jnp.sum(sq.reshape(chunk // _SUBLANES, _SUBLANES, _LANES), axis=0)
        mismf = jnp.sum(
            mismf.reshape(chunk // _SUBLANES, _SUBLANES, _LANES), axis=0)
        return sse_part + sq, xor_part + mismf

    zeros = jnp.zeros((_SUBLANES, _LANES), jnp.float32)
    unroll = n_chunks if n_chunks <= 8 else 4
    sse_part, xor_part = lax.fori_loop(
        0, n_chunks, body, (zeros, zeros), unroll=unroll)

    sse_ref[...] = sse_part
    xor_ref[...] = xor_part


def mse_cross_entropy_loss(output, target):
    assert output.shape == target.shape
    total = output.size

    itemsize = jnp.dtype(output.dtype).itemsize
    row_align = {4: 8, 2: 16, 1: 32}.get(itemsize, 8)  # dtype-aware sublanes

    rows = pl.cdiv(total, _LANES)
    padded_rows = ((rows + row_align - 1) // row_align) * row_align
    block_rows = min(padded_rows, _MAX_BLOCK_ROWS)
    num_blocks = pl.cdiv(padded_rows, block_rows)
    needs_mask = (padded_rows % block_rows) != 0  # ragged last block -> mask

    # Flatten in native dtype (kernel upcasts to f32 after load).  Pad only to
    # the sublane-aligned row count (not to a block multiple); zero padding
    # contributes 0 to both partial sums.
    flat_o = jnp.ravel(output)
    flat_t = jnp.ravel(target)
    padded = padded_rows * _LANES
    if padded != total:
        # TODO(synk): for very large unaligned inputs, replace this
        # materializing pad with a scalar-prefetched element count and
        # element-level in-kernel masking of the final lane row.
        flat_o = jnp.pad(flat_o, (0, padded - total))
        flat_t = jnp.pad(flat_t, (0, padded - total))
    o2d = flat_o.reshape(padded_rows, _LANES)
    t2d = flat_t.reshape(padded_rows, _LANES)

    # Inner-loop chunk must divide block_rows; block_rows is a multiple of
    # row_align, so halving from _CHUNK_ROWS always terminates at >= 8.
    chunk = min(block_rows, _CHUNK_ROWS)
    while block_rows % chunk:
        chunk //= 2

    kernel = functools.partial(
        _loss_kernel,
        block_rows=block_rows,
        chunk=chunk,
        valid_rows=padded_rows,
        needs_mask=needs_mask,
    )

    part_shape = jax.ShapeDtypeStruct(
        (num_blocks, _SUBLANES, _LANES), jnp.float32)
    part_spec = pl.BlockSpec((None, _SUBLANES, _LANES), lambda i: (i, 0, 0))

    # VMEM budget: 2 inputs x 2 buffers x block + small partial outputs.
    vmem_needed = 2 * 2 * block_rows * _LANES * itemsize \
        + 2 * 2 * _SUBLANES * _LANES * 4
    vmem_limit = max(2 * vmem_needed, 16 * 1024 * 1024)

    sse_parts, xor_parts = pl.pallas_call(
        kernel,
        out_shape=(part_shape, part_shape),
        grid_spec=pltpu.PrefetchScalarGridSpec(
            num_scalar_prefetch=0,
            grid=(num_blocks,),
            in_specs=[
                pl.BlockSpec((block_rows, _LANES), lambda i: (i, 0)),
                pl.BlockSpec((block_rows, _LANES), lambda i: (i, 0)),
            ],
            out_specs=[part_spec, part_spec],
        ),
        compiler_params=pltpu.CompilerParams(
            # Independent per-block partials -> both v7x TensorCores can run.
            dimension_semantics=("parallel",),
            vmem_limit_bytes=int(vmem_limit),
        ),
    )(o2d, t2d)

    # Tiny epilogue in plain JAX.
    n = jnp.float32(total)
    mse = jnp.sum(sse_parts) / n
    xent = 100.0 * jnp.sum(xor_parts) / n
    denom = mse + xent
    return jnp.where(denom != 0.0, 2.0 * mse * xent / denom, denom)


def _reference(output, target):
    # Pure-JAX reference mirroring the PyTorch module.
    o = output.astype(jnp.float32)
    t = target.astype(jnp.float32)
    mse = jnp.mean((o - t) ** 2)
    p = (o > 0).astype(jnp.float32)
    q = (t > 0).astype(jnp.float32)
    log_p = jnp.maximum(jnp.log(p), -100.0)
    log_1mp = jnp.maximum(jnp.log(1.0 - p), -100.0)
    xent = jnp.mean(-(q * log_p + (1.0 - q) * log_1mp))
    denom = mse + xent
    return jnp.where(denom != 0.0, 2.0 * mse * xent / denom, denom)


if __name__ == "__main__":
    key = jax.random.PRNGKey(0)
    k1, k2 = jax.random.split(key)
    # Shapes consistent with a dense prediction / target pair (NCHW).
    output = jax.random.normal(k1, (2, 4, 16, 16), dtype=jnp.float32)
    target = jax.random.normal(k2, (2, 4, 16, 16), dtype=jnp.float32)

    loss = jax.block_until_ready(mse_cross_entropy_loss(output, target))
    ref = jax.block_until_ready(_reference(output, target))
    assert jnp.allclose(loss, ref, rtol=1e-5, atol=1e-5), (loss, ref)
    print("KERNEL_OK")
</pallas_src>

<mosaic_0001>
module attributes {stable_mosaic.version = 11 : i64} {
  func.func @_loss_kernel(%arg0: i32, %arg1: memref<16x128xf32, #tpu.memory_space<vmem>>, %arg2: memref<16x128xf32, #tpu.memory_space<vmem>>, %arg3: memref<1x8x128xf32, #tpu.memory_space<vmem>>, %arg4: memref<1x8x128xf32, #tpu.memory_space<vmem>>) attributes {dimension_semantics = [#tpu.dimension_semantics<parallel>], iteration_bounds = array<i64: 1>, scalar_prefetch = 0 : i64, scratch_operands = 0 : i64, tpu.core_type = #tpu.core_type<tc>, window_params = [{transform_indices = @transform_0, window_bounds = array<i64: 16, 128>}, {transform_indices = @transform_1, window_bounds = array<i64: 16, 128>}, {transform_indices = @transform_2, window_bounds = array<i64: 1, 8, 128>}, {transform_indices = @transform_3, window_bounds = array<i64: 1, 8, 128>}]} {
    %cst = arith.constant 0.000000e+00 : f32
    %0 = vector.broadcast %cst : f32 to vector<8x128xf32>
    %c0_i32 = arith.constant 0 : i32
    %c16_i32 = arith.constant 16 : i32
    %1 = arith.muli %c0_i32, %c16_i32 : i32
    %2 = tpu.assume_multiple %1, 16 : i32
    %3 = arith.index_cast %2 : i32 to index
    %c0 = arith.constant 0 : index
    %4 = vector.load %arg1[%3, %c0] : memref<16x128xf32, #tpu.memory_space<vmem>>, vector<16x128xf32>
    %5 = arith.index_cast %2 : i32 to index
    %c0_0 = arith.constant 0 : index
    %6 = vector.load %arg2[%5, %c0_0] : memref<16x128xf32, #tpu.memory_space<vmem>>, vector<16x128xf32>
    %7 = arith.subf %4, %6 : vector<16x128xf32>
    %8 = arith.mulf %7, %7 : vector<16x128xf32>
    %cst_1 = arith.constant 0.000000e+00 : f32
    %9 = vector.broadcast %cst_1 : f32 to vector<16x128xf32>
    %10 = arith.cmpf ogt, %4, %9 : vector<16x128xf32>
    %cst_2 = arith.constant 0.000000e+00 : f32
    %11 = vector.broadcast %cst_2 : f32 to vector<16x128xf32>
    %12 = arith.cmpf ogt, %6, %11 : vector<16x128xf32>
    %13 = arith.xori %10, %12 : vector<16x128xi1>
    %cst_3 = arith.constant 1.000000e+00 : f32
    %cst_4 = arith.constant 0.000000e+00 : f32
    %14 = vector.broadcast %cst_3 : f32 to vector<16x128xf32>
    %15 = vector.broadcast %cst_4 : f32 to vector<16x128xf32>
    %16 = arith.select %13, %14, %15 : vector<16x128xi1>, vector<16x128xf32>
    %17 = vector.shape_cast %8 : vector<16x128xf32> to vector<2x8x128xf32>
    %cst_5 = arith.constant dense<0.000000e+00> : vector<8x128xf32>
    %18 = vector.multi_reduction <add>, %17, %cst_5 [0] : vector<2x8x128xf32> to vector<8x128xf32>
    %19 = vector.shape_cast %16 : vector<16x128xf32> to vector<2x8x128xf32>
    %cst_6 = arith.constant dense<0.000000e+00> : vector<8x128xf32>
    %20 = vector.multi_reduction <add>, %19, %cst_6 [0] : vector<2x8x128xf32> to vector<8x128xf32>
    %21 = arith.addf %0, %18 : vector<8x128xf32>
    %22 = arith.addf %0, %20 : vector<8x128xf32>
    %c1_i32 = arith.constant 1 : i32
    %c0_7 = arith.constant 0 : index
    %c0_8 = arith.constant 0 : index
    %c0_9 = arith.constant 0 : index
    %23 = vector.load %arg3[%c0_7, %c0_8, %c0_9] : memref<1x8x128xf32, #tpu.memory_space<vmem>>, vector<1x8x128xf32>
    %24 = vector.shape_cast %23 : vector<1x8x128xf32> to vector<8x128xf32>
    %25 = vector.shape_cast %21 : vector<8x128xf32> to vector<1x8x128xf32>
    tpu.vector_store %arg3[%c0_7, %c0_8, %c0_9], %25 {strides = array<i32>} : memref<1x8x128xf32, #tpu.memory_space<vmem>>, vector<1x8x128xf32>,
    %c0_10 = arith.constant 0 : index
    %c0_11 = arith.constant 0 : index
    %c0_12 = arith.constant 0 : index
    %26 = vector.load %arg4[%c0_10, %c0_11, %c0_12] : memref<1x8x128xf32, #tpu.memory_space<vmem>>, vector<1x8x128xf32>
    %27 = vector.shape_cast %26 : vector<1x8x128xf32> to vector<8x128xf32>
    %28 = vector.shape_cast %22 : vector<8x128xf32> to vector<1x8x128xf32>
    tpu.vector_store %arg4[%c0_10, %c0_11, %c0_12], %28 {strides = array<i32>} : memref<1x8x128xf32, #tpu.memory_space<vmem>>, vector<1x8x128xf32>,
    return
  }
  func.func @transform_0(%arg0: i32) -> (i32, i32) {
    %c0_i32 = arith.constant 0 : i32
    %c0_i32_0 = arith.constant 0 : i32
    return %arg0, %c0_i32 : i32, i32
  }
  func.func @transform_1(%arg0: i32) -> (i32, i32) {
    %c0_i32 = arith.constant 0 : i32
    %c0_i32_0 = arith.constant 0 : i32
    return %arg0, %c0_i32 : i32, i32
  }
  func.func @transform_2(%arg0: i32) -> (i32, i32, i32) {
    %c0_i32 = arith.constant 0 : i32
    %c0_i32_0 = arith.constant 0 : i32
    %c0_i32_1 = arith.constant 0 : i32
    return %arg0, %c0_i32, %c0_i32_0 : i32, i32, i32
  }
  func.func @transform_3(%arg0: i32) -> (i32, i32, i32) {
    %c0_i32 = arith.constant 0 : i32
    %c0_i32_0 = arith.constant 0 : i32
    %c0_i32_1 = arith.constant 0 : i32
    return %arg0, %c0_i32, %c0_i32_0 : i32, i32, i32
  }
}

</mosaic_0001>

<llo_original>
// kernel: tpu_custom_call.1
$region0: #{tpu_custom_call.1}
  #allocation0 [shape = 'u32[]', space=smem, size = 0x4, offset = 0x4, fixed_abs, tag = 'smem constant byte address 0x4 - core index']
  #allocation1 [shape = 'u32[72,128]{1,0:T(1,128)}', space=vmem, size = 0x9000, scoped, tag = 'internal scratch']
  %s0 = inlined_call_operand.hbm [shape: f32[16,128], index: 0, kind: input, shape index: {}]
  %s1 = inlined_call_operand.hbm [shape: f32[16,128], index: 1, kind: input, shape index: {}]
  %s2 = inlined_call_operand.hbm [shape: f32[1,8,128], index: 2, kind: output, shape index: {0}]
  %s3 = inlined_call_operand.hbm [shape: f32[1,8,128], index: 3, kind: output, shape index: {1}]
  %4 = xla_tuple %s2, %s3
  %s5 = sld [smem:[#allocation0]]
  $region34: #{tpu_custom_call.1} parent=0
    _
  %s7 = ssub.s32 1, %s5
  %s8 = scalar_select 0, %s7, %s5
  $region1: #{tpu_custom_call.1} parent=0
    #allocation2 [shape = 'u8[8192]{0}', space=vmem, size = 0x2000, scoped, tag = 'input window, operand 0, single buffered']
    #allocation3 [shape = 's32[1]{0}', space=sflag, size = 0x4, scoped, tag = 'scoped memory for tpu_custom_call.1']
    #allocation4 [shape = 's32[1]{0}', space=sflag, size = 0x4, scoped, tag = 'scoped memory for tpu_custom_call.1']
    #allocation5 [shape = 'u8[8192]{0}', space=vmem, size = 0x2000, scoped, tag = 'input window, operand 1, single buffered']
    #allocation6 [shape = 's32[1]{0}', space=sflag, size = 0x4, scoped, tag = 'scoped memory for tpu_custom_call.1']
    #allocation7 [shape = 'u8[4096]{0}', space=vmem, size = 0x1000, scoped, tag = 'output window, operand 0, single buffered']
    #allocation8 [shape = 'u8[4096]{0}', space=vmem, size = 0x1000, scoped, tag = 'output window, operand 1, single buffered']
    #allocation9 [shape = 's32[1]{0}', space=sflag, size = 0x4, scoped, tag = 'scoped memory for tpu_custom_call.1']
    %9 = vsyncpa [#allocation3], 0
    %10 = vsyncpa [#allocation6], 0
    %11 = vsyncpa [#allocation4], 0
    %12 = vsyncpa [#allocation9], 0
    // Predicated region
    $region2: #{tpu_custom_call.1} parent=1 // pred_check
      _
    $region3: #{tpu_custom_call.1} parent=1 // pred_check_branch
      %14 = sbr.rel (0) target = $region5
    $region4: #{tpu_custom_call.1} parent=1 // pred_region
      %16 = vsyncadd [#allocation3], 0
      %s17 = sshll.u32 %s0, 4
      %s18 = int_to_ptr.hbm [resolvable:$true] %s17
      %s19 = sshll.u32 [#allocation2], 4
      %s20 = int_to_ptr.vmem [resolvable:$true] %s19
      %25 = dma.hbm_to_vmem [thread:$0]  %s18, 256, %s20, [#allocation3], 128, 128, 8
    $region5: #{tpu_custom_call.1} parent=1 // pred_fallthru
      _
    // Predicated region
    $region6: #{tpu_custom_call.1} parent=1 // pred_check
      _
    $region7: #{tpu_custom_call.1} parent=1 // pred_check_branch
      %27 = sbr.rel (0) target = $region9
    $region8: #{tpu_custom_call.1} parent=1 // pred_region
      %29 = vsyncadd [#allocation6], 0
      %s30 = sshll.u32 %s1, 4
      %s31 = int_to_ptr.hbm [resolvable:$true] %s30
      %s32 = sshll.u32 [#allocation5], 4
      %s33 = int_to_ptr.vmem [resolvable:$true] %s32
      %38 = dma.hbm_to_vmem [thread:$0]  %s31, 256, %s33, [#allocation6], 128, 128, 8
    $region9: #{tpu_custom_call.1} parent=1 // pred_fallthru
      _
    // Predicated region
    $region10: #{tpu_custom_call.1} parent=1 // pred_check
      _
    $region11: #{tpu_custom_call.1} parent=1 // pred_check_branch
      %40 = sbr.rel (0) target = $region13
    $region12: #{tpu_custom_call.1} parent=1 // pred_region
      %42 = dma.done [#allocation3], 256
    $region13: #{tpu_custom_call.1} parent=1 // pred_fallthru
      _
    // Predicated region
    $region14: #{tpu_custom_call.1} parent=1 // pred_check
      _
    $region15: #{tpu_custom_call.1} parent=1 // pred_check_branch
      %44 = sbr.rel (0) target = $region17
    $region16: #{tpu_custom_call.1} parent=1 // pred_region
      %46 = dma.done [#allocation6], 256
    $region17: #{tpu_custom_call.1} parent=1 // pred_fallthru
      _
    %v47 = vld [vmem:[#allocation2] sm:$0xff]
    %v48 = vld [vmem:[#allocation2 + $0x8] sm:$0xff]
    %v49 = vld [vmem:[#allocation5] sm:$0xff]
    %v50 = vld [vmem:[#allocation5 + $0x8] sm:$0xff]
    %v51 = vsub.f32 %v47, %v49
    %v52 = vsub.f32 %v48, %v50
    %v53 = vmul.f32 %v51, %v51
    %v54 = vmul.f32 %v52, %v52
    %vm55 = vcmp.gt.f32.partialorder %v47, 0.0
    %vm56 = vcmp.gt.f32.partialorder %v48, 0.0
    %vm57 = vcmp.gt.f32.partialorder %v49, 0.0
    %vm58 = vcmp.gt.f32.partialorder %v50, 0.0
    %vm59 = vmxor %vm55, %vm57
    %vm60 = vmxor %vm56, %vm58
    %v61 = vsel %vm59, 1.0, 0.0
    %v62 = vsel %vm60, 1.0, 0.0
    %v63 = vadd.f32 %v53, %v54
    %v64 = vadd.f32 %v61, %v62
    %v65 = vadd.f32 %v63, 0.0
    %v66 = vadd.f32 %v64, 0.0
    %67 = vst [vmem:[#allocation7] sm:$0xff] %v65
    %68 = vst [vmem:[#allocation8] sm:$0xff] %v66
    // Predicated region
    $region18: #{tpu_custom_call.1} parent=1 // pred_check
      _
    $region19: #{tpu_custom_call.1} parent=1 // pred_check_branch
      %70 = sbr.rel (0) target = $region21
    $region20: #{tpu_custom_call.1} parent=1 // pred_region
      %72 = vsyncadd [#allocation4], 0
      %s74 = sshll.u32 [#allocation7], 4
      %s75 = int_to_ptr.vmem [resolvable:$true] %s74
      %s76 = sshll.u32 %s2, 4
      %s77 = int_to_ptr.hbm [resolvable:$true] %s76
      %79 = dma.vmem_to_hbm [thread:$0]  %s75, 128, %s77, [#allocation4]
    $region21: #{tpu_custom_call.1} parent=1 // pred_fallthru
      _
    // Predicated region
    $region22: #{tpu_custom_call.1} parent=1 // pred_check
      _
    $region23: #{tpu_custom_call.1} parent=1 // pred_check_branch
      %81 = sbr.rel (0) target = $region25
    $region24: #{tpu_custom_call.1} parent=1 // pred_region
      %83 = vsyncadd [#allocation9], 0
      %s85 = sshll.u32 [#allocation8], 4
      %s86 = int_to_ptr.vmem [resolvable:$true] %s85
      %s87 = sshll.u32 %s3, 4
      %s88 = int_to_ptr.hbm [resolvable:$true] %s87
      %90 = dma.vmem_to_hbm [thread:$0]  %s86, 128, %s88, [#allocation9]
    $region25: #{tpu_custom_call.1} parent=1 // pred_fallthru
      _
    // Predicated region
    $region26: #{tpu_custom_call.1} parent=1 // pred_check
      _
    $region27: #{tpu_custom_call.1} parent=1 // pred_check_branch
      %92 = sbr.rel (0) target = $region29
    $region28: #{tpu_custom_call.1} parent=1 // pred_region
      %94 = dma.done [#allocation4], 128
    $region29: #{tpu_custom_call.1} parent=1 // pred_fallthru
      _
    // Predicated region
    $region30: #{tpu_custom_call.1} parent=1 // pred_check
      _
    $region31: #{tpu_custom_call.1} parent=1 // pred_check_branch
      %96 = sbr.rel (0) target = $region33
    $region32: #{tpu_custom_call.1} parent=1 // pred_region
      %98 = dma.done [#allocation9], 128
    $region33: #{tpu_custom_call.1} parent=1 // pred_fallthru
      _
    %99 = vsyncpa [#allocation3], 1
    %100 = vsyncpa [#allocation6], 1
    %101 = vsyncpa [#allocation4], 1
    %102 = vsyncpa [#allocation9], 1

</llo_original>
